<compile_context>
chip_gen: v5e
topology: v5e:2x2
jax: 0.10.0
libtpu: 0.0.40
codegen_flags: <defaults>
</compile_context>

<pallas_src>
import functools

import numpy as np
import jax
import jax.numpy as jnp
from jax.experimental import pallas as pl
from jax.experimental.pallas import tpu as pltpu

SCALE = 4
LEAKY_SLOPE = 0.01


def _bilinear_matrix(n_in, n_out):
    """(n_out, n_in) numpy interpolation matrix for align_corners=True bilinear."""
    i = np.arange(n_out)
    if n_out == 1:
        src = np.zeros(1, dtype=np.float64)
    else:
        src = i * (n_in - 1) / (n_out - 1)
    lo = np.clip(np.floor(src).astype(np.int64), 0, max(n_in - 2, 0))
    frac = (src - lo).astype(np.float32)
    A = np.zeros((n_out, n_in), dtype=np.float32)
    A[i, lo] += (1.0 - frac)
    A[i, np.minimum(lo + 1, n_in - 1)] += frac
    return A


def _vmem_capacity_bytes():
    """Per-core VMEM capacity; conservative v7x default if the query fails."""
    try:
        cap = getattr(pltpu.get_tpu_info(), "vmem_capacity_bytes", None)
        if cap:
            return int(cap)
    except Exception:
        pass
    return 64 * 1024 * 1024


def _vmem_estimate(B, H, W, Ho, Wo):
    """Rough per-grid-step VMEM footprint (bytes) for a group of B images."""
    Wb_in, Wb_out = B * W, B * Wo
    in_bytes = 2 * (H * Wb_in * 2)                      # double-buffered bf16 input
    mats = 2 * (Ho * H * 4 + Wb_in * Wb_out * 2)        # A (f32) + block-diag Bt (bf16)
    out_bytes = 2 * (B * Ho * Wo * 4)                   # double-buffered f32 output
    live = 8 * (Ho * Wb_out * 4)                        # conv-loop live tiles / spill
    return in_bytes + mats + out_bytes + live


def _choose_group(N, H, W, Ho, Wo, budget):
    """Images folded (along lanes) per grid step.  Preference order:
       lane-dense (multiple of 128) > >=128 lanes > >=2 grid steps (v7x megacore)
       > modest slab (<=512 lanes, caps block-diag MXU waste) > smallest group,
       all subject to the VMEM budget."""
    best = None
    for d in range(1, N + 1):
        if N % d:
            continue
        if _vmem_estimate(d, H, W, Ho, Wo) > budget:
            continue
        lanes = d * Wo
        score = (lanes % 128 == 0, lanes >= 128, N // d >= 2, lanes <= 512, -d)
        if best is None or score > best[0]:
            best = (score, d)
    return best[1] if best else 1


def _upsample_cnn_kernel(Wo, x_ref, A_ref, Bt_ref, p_ref, o_ref):
    # x_ref : (H, B*W)        bf16 input block (B images folded along lanes)
    # A_ref : (Ho, H)         f32 row-interpolation matrix
    # Bt_ref: (B*W, B*Wo)     bf16 block-diagonal column-interpolation^T
    # p_ref : SMEM f32[30]    [3 convs x 9 BN-folded tap weights | 3 folded biases]
    # o_ref : (B, 1, Ho, Wo)  f32 de-interleaved output block

    # Bilinear upsample (align_corners=True): column interpolation first (on the
    # H pre-upsample rows -> ~4x fewer MXU pushes for the block-diagonal matmul),
    # then row interpolation in f32 (tiny K, keeps full parity).
    t = jnp.dot(x_ref[...], Bt_ref[...],
                preferred_element_type=jnp.float32)              # (H, B*Wo) f32
    y = jnp.dot(A_ref[...], t, preferred_element_type=jnp.float32)  # (Ho, B*Wo)

    Ho, Wb = y.shape
    n_imgs = Wb // Wo

    # Boundary masks for reflect padding (iotas die after mask construction).
    row = jax.lax.broadcasted_iota(jnp.int32, (Ho, Wb), 0)
    col = jax.lax.broadcasted_iota(jnp.int32, (Ho, Wb), 1)
    top = row == 0
    bot = row == Ho - 1
    if n_imgs > 1 and (Wo & (Wo - 1)) == 0:
        col_in = col & (Wo - 1)            # per-image column index, O(1)
        left = col_in == 0
        right = col_in == Wo - 1
    else:
        left = col == 0
        right = col == Wo - 1
        for i in range(1, n_imgs):         # per-image edges inside folded lanes
            left = jnp.logical_or(left, col == i * Wo)
            right = jnp.logical_or(right, col == i * Wo + Wo - 1)

    # 3 x (Conv2d 3x3 reflect pad, eval-mode BN folded in); LeakyReLU after 1 & 2.
    # Separable restructure: shared column taps, weighted kernel rows, then
    # sublane rolls of only the dy=-1 / dy=+1 rows.
    for c in range(3):
        w = [p_ref[c * 9 + k] for k in range(9)]   # SMEM scalars, read once
        b = p_ref[27 + c]

        lft = pltpu.roll(y, 1, 1)          # lft[:, j] = y[:, j-1]
        rgt = pltpu.roll(y, Wb - 1, 1)     # rgt[:, j] = y[:, j+1]
        c_m = jnp.where(left, rgt, lft)    # dx = -1 tap (per-image reflect)
        c_p = jnp.where(right, lft, rgt)   # dx = +1 tap (per-image reflect)

        h_m = w[0] * c_m + w[1] * y + w[2] * c_p        # dy = -1 kernel row
        up_m = pltpu.roll(h_m, 1, 0)       # up_m[i] = h_m[i-1]
        dn_m = pltpu.roll(h_m, Ho - 1, 0)  # dn_m[i] = h_m[i+1]
        acc = jnp.where(top, dn_m, up_m)   # reflect at row 0

        h_p = w[6] * c_m + w[7] * y + w[8] * c_p        # dy = +1 kernel row
        up_p = pltpu.roll(h_p, 1, 0)
        dn_p = pltpu.roll(h_p, Ho - 1, 0)
        acc = acc + jnp.where(bot, up_p, dn_p)          # reflect at row Ho-1

        y = acc + (w[3] * c_m + w[4] * y + w[5] * c_p) + b   # dy = 0 row + bias
        if c < 2:
            y = jnp.maximum(y, LEAKY_SLOPE * y)         # LeakyReLU(0.01)

    # De-interleaved stores: one (Ho, Wo) slab per image straight into the NCHW
    # output block -> no wrapper-side transpose / extra HBM pass on the f32 output.
    for i in range(n_imgs):
        o_ref[i, 0, :, :] = y[:, i * Wo:(i + 1) * Wo].astype(o_ref.dtype)


def upsample_wrapper_forward(x, params):
    """x: NCHW float32 with C == 1; params: float32[30] BN-folded conv params."""
    N, C, H, W = x.shape
    assert C == 1, "postprocess='cnn' path requires a single channel"
    Ho, Wo = H * SCALE, W * SCALE

    cap = _vmem_capacity_bytes()
    B = _choose_group(N, H, W, Ho, Wo, budget=int(0.40 * cap))
    G = N // B
    Wb_in, Wb_out = B * W, B * Wo

    # Interpolation matrices. Column matrix (MXU operand) in bf16; row matrix in
    # f32 (tiny K, keeps parity with the f32 PyTorch reference).
    A = jnp.asarray(_bilinear_matrix(H, Ho), jnp.float32)         # (Ho, H)
    Bt1 = _bilinear_matrix(W, Wo).T                               # (W, Wo)
    Btb = np.zeros((Wb_in, Wb_out), np.float32)
    for i in range(B):
        Btb[i * W:(i + 1) * W, i * Wo:(i + 1) * Wo] = Bt1
    Bt = jnp.asarray(Btb, jnp.bfloat16)                           # block-diagonal

    # Fold each group of B images along lanes: (N,1,H,W) -> (G, H, B*W). This is
    # the small pre-upsample tensor (bf16), ~32x cheaper than the f32 output.
    xg = (x.reshape(G, B, H, W)
           .transpose(0, 2, 1, 3)
           .reshape(G, H, Wb_in)
           .astype(jnp.bfloat16))

    est = _vmem_estimate(B, H, W, Ho, Wo)
    vmem_limit = int(min(0.75 * cap, max(32 * 1024 * 1024, 2 * est)))

    out = pl.pallas_call(
        functools.partial(_upsample_cnn_kernel, Wo),
        out_shape=jax.ShapeDtypeStruct((N, 1, Ho, Wo), jnp.float32),
        grid=(G,),
        in_specs=[
            pl.BlockSpec((None, H, Wb_in), lambda g: (g, 0, 0)),
            pl.BlockSpec((Ho, H), lambda g: (0, 0)),
            pl.BlockSpec((Wb_in, Wb_out), lambda g: (0, 0)),
            pl.BlockSpec(memory_space=pltpu.MemorySpace.SMEM),
        ],
        out_specs=pl.BlockSpec((B, 1, Ho, Wo), lambda g: (g, 0, 0, 0)),
        compiler_params=pltpu.CompilerParams(
            dimension_semantics=("parallel",),
            vmem_limit_bytes=vmem_limit,
        ),
    )(xg, A, Bt, params)
    return out


def fold_postprocess_params(w, b, bn_scale, bn_shift):
    """Fold eval-mode BatchNorm after conv1/conv2 into their weights/biases."""
    scl = jnp.concatenate([bn_scale, jnp.ones((1,), jnp.float32)])
    sft = jnp.concatenate([bn_shift, jnp.zeros((1,), jnp.float32)])
    wf = w * scl[:, None, None]                  # (3,3,3)
    bf = b * scl + sft                           # (3,)
    return jnp.concatenate([wf.reshape(-1), bf]).astype(jnp.float32)   # length 30


def make_params(key):
    """Deterministic synthetic params for the 3-conv / 2-BN postprocess chain."""
    kw, kb, kg, kbt = jax.random.split(key, 4)
    w = jax.random.uniform(kw, (3, 3, 3), jnp.float32, -1.0 / 3.0, 1.0 / 3.0)
    b = jax.random.uniform(kb, (3,), jnp.float32, -1.0 / 3.0, 1.0 / 3.0)
    gamma = jax.random.uniform(kg, (2,), jnp.float32, 0.5, 1.5)
    beta = jax.random.uniform(kbt, (2,), jnp.float32, -0.5, 0.5)
    running_mean = jnp.zeros((2,), jnp.float32)
    running_var = jnp.ones((2,), jnp.float32)
    eps = 1e-5
    scale = gamma / jnp.sqrt(running_var + eps)
    shift = beta - running_mean * scale
    return fold_postprocess_params(w, b, scale, shift)


def _reference_forward(x, params):
    """Pure-JAX reference; mirrors the kernel's bf16 input/column-matrix rounding,
    but uses an independent NCHW reflect-pad 3x3 conv implementation in f32."""
    N, C, H, W = x.shape
    Ho, Wo = H * SCALE, W * SCALE
    A = jnp.asarray(_bilinear_matrix(H, Ho), jnp.float32)
    Bc = jnp.asarray(_bilinear_matrix(W, Wo), jnp.bfloat16).astype(jnp.float32)
    xb = x.astype(jnp.bfloat16).astype(jnp.float32)
    t = jnp.einsum('nchw,pw->nchp', xb, Bc)          # column interpolation
    y = jnp.einsum('oh,nchp->ncop', A, t)            # row interpolation
    p = np.asarray(params)
    for c in range(3):
        w = p[c * 9:(c + 1) * 9].reshape(3, 3)
        b = p[27 + c]
        yp = jnp.pad(y, ((0, 0), (0, 0), (1, 1), (1, 1)), mode='reflect')
        acc = jnp.zeros_like(y)
        for dy in range(3):
            for dx in range(3):
                acc = acc + w[dy, dx] * yp[:, :, dy:dy + Ho, dx:dx + Wo]
        y = acc + b
        if c < 2:
            y = jnp.where(y >= 0, y, LEAKY_SLOPE * y)
    return y


if __name__ == "__main__":
    key = jax.random.PRNGKey(0)
    kx, kp = jax.random.split(key)
    x = jax.random.normal(kx, (2, 1, 16, 16), jnp.float32)   # NCHW, C=1
    params = make_params(kp)

    out = upsample_wrapper_forward(x, params)
    out = jax.block_until_ready(out)
    assert out.shape == (2, 1, 64, 64), out.shape
    assert out.dtype == jnp.float32
    assert bool(jnp.isfinite(out).all())

    ref = _reference_forward(x, params)
    max_err = float(jnp.max(jnp.abs(out - ref)))
    assert max_err < 5e-3, f"max abs error vs reference: {max_err}"
    print("KERNEL_OK")
</pallas_src>

<mosaic_0001>
module attributes {stable_mosaic.version = 11 : i64} {
  func.func @_upsample_cnn_kernel(%arg0: i32, %arg1: memref<1x16x32xbf16, #tpu.memory_space<vmem>>, %arg2: memref<64x16xf32, #tpu.memory_space<vmem>>, %arg3: memref<32x128xbf16, #tpu.memory_space<vmem>>, %arg4: memref<30xf32, #tpu.memory_space<smem>>, %arg5: memref<2x1x64x64xf32, #tpu.memory_space<vmem>>) attributes {dimension_semantics = [#tpu.dimension_semantics<parallel>], iteration_bounds = array<i64: 1>, scalar_prefetch = 0 : i64, scratch_operands = 0 : i64, tpu.core_type = #tpu.core_type<tc>, window_params = [{transform_indices = @transform_0, window_bounds = array<i64: 1, 16, 32>}, {pipeline_mode = #tpu.pipeline_mode<synchronous>, transform_indices = @transform_1, window_bounds = array<i64: 64, 16>}, {pipeline_mode = #tpu.pipeline_mode<synchronous>, transform_indices = @transform_2, window_bounds = array<i64: 32, 128>}, {transform_indices = @transform_3, window_bounds = array<i64: 30>}, {transform_indices = @transform_4, window_bounds = array<i64: 2, 1, 64, 64>}]} {
    %c0 = arith.constant 0 : index
    %c0_0 = arith.constant 0 : index
    %c0_1 = arith.constant 0 : index
    %0 = vector.load %arg1[%c0, %c0_0, %c0_1] : memref<1x16x32xbf16, #tpu.memory_space<vmem>>, vector<1x16x32xbf16>
    %1 = vector.shape_cast %0 : vector<1x16x32xbf16> to vector<16x32xbf16>
    %c0_2 = arith.constant 0 : index
    %c0_3 = arith.constant 0 : index
    %2 = vector.load %arg3[%c0_2, %c0_3] : memref<32x128xbf16, #tpu.memory_space<vmem>>, vector<32x128xbf16>
    %cst = arith.constant dense<0.000000e+00> : vector<16x128xf32>
    %3 = tpu.matmul %1, %2, %cst {dimension_numbers = #tpu.dot_dimension_numbers<[1], [0], [0], [1], [0, 0, 1, 1], [], []>} : vector<16x32xbf16>, vector<32x128xbf16>, vector<16x128xf32> -> vector<16x128xf32>
    %c0_4 = arith.constant 0 : index
    %c0_5 = arith.constant 0 : index
    %4 = vector.load %arg2[%c0_4, %c0_5] : memref<64x16xf32, #tpu.memory_space<vmem>>, vector<64x16xf32>
    %cst_6 = arith.constant dense<0.000000e+00> : vector<64x128xf32>
    %5 = tpu.matmul %4, %3, %cst_6 {dimension_numbers = #tpu.dot_dimension_numbers<[1], [0], [0], [1], [0, 0, 1, 1], [], []>} : vector<64x16xf32>, vector<16x128xf32>, vector<64x128xf32> -> vector<64x128xf32>
    %6 = tpu.iota {dimensions = array<i32: 0>} : vector<64x128xi32>
    %7 = tpu.iota {dimensions = array<i32: 1>} : vector<64x128xi32>
    %c0_i32 = arith.constant 0 : i32
    %8 = vector.broadcast %c0_i32 : i32 to vector<64x128xi32>
    %9 = arith.cmpi eq, %6, %8 : vector<64x128xi32>
    %c63_i32 = arith.constant 63 : i32
    %10 = vector.broadcast %c63_i32 : i32 to vector<64x128xi32>
    %11 = arith.cmpi eq, %6, %10 : vector<64x128xi32>
    %c63_i32_7 = arith.constant 63 : i32
    %12 = vector.broadcast %c63_i32_7 : i32 to vector<64x128xi32>
    %13 = arith.andi %7, %12 : vector<64x128xi32>
    %c0_i32_8 = arith.constant 0 : i32
    %14 = vector.broadcast %c0_i32_8 : i32 to vector<64x128xi32>
    %15 = arith.cmpi eq, %13, %14 : vector<64x128xi32>
    %c63_i32_9 = arith.constant 63 : i32
    %16 = vector.broadcast %c63_i32_9 : i32 to vector<64x128xi32>
    %17 = arith.cmpi eq, %13, %16 : vector<64x128xi32>
    %c0_10 = arith.constant 0 : index
    %18 = memref.load %arg4[%c0_10] : memref<30xf32, #tpu.memory_space<smem>>
    %c1 = arith.constant 1 : index
    %19 = memref.load %arg4[%c1] : memref<30xf32, #tpu.memory_space<smem>>
    %c2 = arith.constant 2 : index
    %20 = memref.load %arg4[%c2] : memref<30xf32, #tpu.memory_space<smem>>
    %c3 = arith.constant 3 : index
    %21 = memref.load %arg4[%c3] : memref<30xf32, #tpu.memory_space<smem>>
    %c4 = arith.constant 4 : index
    %22 = memref.load %arg4[%c4] : memref<30xf32, #tpu.memory_space<smem>>
    %c5 = arith.constant 5 : index
    %23 = memref.load %arg4[%c5] : memref<30xf32, #tpu.memory_space<smem>>
    %c6 = arith.constant 6 : index
    %24 = memref.load %arg4[%c6] : memref<30xf32, #tpu.memory_space<smem>>
    %c7 = arith.constant 7 : index
    %25 = memref.load %arg4[%c7] : memref<30xf32, #tpu.memory_space<smem>>
    %c8 = arith.constant 8 : index
    %26 = memref.load %arg4[%c8] : memref<30xf32, #tpu.memory_space<smem>>
    %c27 = arith.constant 27 : index
    %27 = memref.load %arg4[%c27] : memref<30xf32, #tpu.memory_space<smem>>
    %c1_i32 = arith.constant 1 : i32
    %28 = tpu.dynamic_rotate %5 by %c1_i32 dim 1 : vector<64x128xf32>, i32 -> vector<64x128xf32>
    %c127_i32 = arith.constant 127 : i32
    %29 = tpu.dynamic_rotate %5 by %c127_i32 dim 1 : vector<64x128xf32>, i32 -> vector<64x128xf32>
    %30 = arith.select %15, %29, %28 : vector<64x128xi1>, vector<64x128xf32>
    %31 = arith.select %17, %28, %29 : vector<64x128xi1>, vector<64x128xf32>
    %32 = vector.broadcast %18 : f32 to vector<64x128xf32>
    %33 = arith.mulf %32, %30 : vector<64x128xf32>
    %34 = vector.broadcast %19 : f32 to vector<64x128xf32>
    %35 = arith.mulf %34, %5 : vector<64x128xf32>
    %36 = arith.addf %33, %35 : vector<64x128xf32>
    %37 = vector.broadcast %20 : f32 to vector<64x128xf32>
    %38 = arith.mulf %37, %31 : vector<64x128xf32>
    %39 = arith.addf %36, %38 : vector<64x128xf32>
    %c1_i32_11 = arith.constant 1 : i32
    %40 = tpu.dynamic_rotate %39 by %c1_i32_11 dim 0 : vector<64x128xf32>, i32 -> vector<64x128xf32>
    %c63_i32_12 = arith.constant 63 : i32
    %41 = tpu.dynamic_rotate %39 by %c63_i32_12 dim 0 : vector<64x128xf32>, i32 -> vector<64x128xf32>
    %42 = arith.select %9, %41, %40 : vector<64x128xi1>, vector<64x128xf32>
    %43 = vector.broadcast %24 : f32 to vector<64x128xf32>
    %44 = arith.mulf %43, %30 : vector<64x128xf32>
    %45 = vector.broadcast %25 : f32 to vector<64x128xf32>
    %46 = arith.mulf %45, %5 : vector<64x128xf32>
    %47 = arith.addf %44, %46 : vector<64x128xf32>
    %48 = vector.broadcast %26 : f32 to vector<64x128xf32>
    %49 = arith.mulf %48, %31 : vector<64x128xf32>
    %50 = arith.addf %47, %49 : vector<64x128xf32>
    %c1_i32_13 = arith.constant 1 : i32
    %51 = tpu.dynamic_rotate %50 by %c1_i32_13 dim 0 : vector<64x128xf32>, i32 -> vector<64x128xf32>
    %c63_i32_14 = arith.constant 63 : i32
    %52 = tpu.dynamic_rotate %50 by %c63_i32_14 dim 0 : vector<64x128xf32>, i32 -> vector<64x128xf32>
    %53 = arith.select %11, %51, %52 : vector<64x128xi1>, vector<64x128xf32>
    %54 = arith.addf %42, %53 : vector<64x128xf32>
    %55 = vector.broadcast %21 : f32 to vector<64x128xf32>
    %56 = arith.mulf %55, %30 : vector<64x128xf32>
    %57 = vector.broadcast %22 : f32 to vector<64x128xf32>
    %58 = arith.mulf %57, %5 : vector<64x128xf32>
    %59 = arith.addf %56, %58 : vector<64x128xf32>
    %60 = vector.broadcast %23 : f32 to vector<64x128xf32>
    %61 = arith.mulf %60, %31 : vector<64x128xf32>
    %62 = arith.addf %59, %61 : vector<64x128xf32>
    %63 = arith.addf %54, %62 : vector<64x128xf32>
    %64 = vector.broadcast %27 : f32 to vector<64x128xf32>
    %65 = arith.addf %63, %64 : vector<64x128xf32>
    %cst_15 = arith.constant 0.00999999977 : f32
    %66 = vector.broadcast %cst_15 : f32 to vector<64x128xf32>
    %67 = arith.mulf %66, %65 : vector<64x128xf32>
    %68 = arith.maximumf %65, %67 : vector<64x128xf32>
    %c9 = arith.constant 9 : index
    %69 = memref.load %arg4[%c9] : memref<30xf32, #tpu.memory_space<smem>>
    %c10 = arith.constant 10 : index
    %70 = memref.load %arg4[%c10] : memref<30xf32, #tpu.memory_space<smem>>
    %c11 = arith.constant 11 : index
    %71 = memref.load %arg4[%c11] : memref<30xf32, #tpu.memory_space<smem>>
    %c12 = arith.constant 12 : index
    %72 = memref.load %arg4[%c12] : memref<30xf32, #tpu.memory_space<smem>>
    %c13 = arith.constant 13 : index
    %73 = memref.load %arg4[%c13] : memref<30xf32, #tpu.memory_space<smem>>
    %c14 = arith.constant 14 : index
    %74 = memref.load %arg4[%c14] : memref<30xf32, #tpu.memory_space<smem>>
    %c15 = arith.constant 15 : index
    %75 = memref.load %arg4[%c15] : memref<30xf32, #tpu.memory_space<smem>>
    %c16 = arith.constant 16 : index
    %76 = memref.load %arg4[%c16] : memref<30xf32, #tpu.memory_space<smem>>
    %c17 = arith.constant 17 : index
    %77 = memref.load %arg4[%c17] : memref<30xf32, #tpu.memory_space<smem>>
    %c28 = arith.constant 28 : index
    %78 = memref.load %arg4[%c28] : memref<30xf32, #tpu.memory_space<smem>>
    %c1_i32_16 = arith.constant 1 : i32
    %79 = tpu.dynamic_rotate %68 by %c1_i32_16 dim 1 : vector<64x128xf32>, i32 -> vector<64x128xf32>
    %c127_i32_17 = arith.constant 127 : i32
    %80 = tpu.dynamic_rotate %68 by %c127_i32_17 dim 1 : vector<64x128xf32>, i32 -> vector<64x128xf32>
    %81 = arith.select %15, %80, %79 : vector<64x128xi1>, vector<64x128xf32>
    %82 = arith.select %17, %79, %80 : vector<64x128xi1>, vector<64x128xf32>
    %83 = vector.broadcast %69 : f32 to vector<64x128xf32>
    %84 = arith.mulf %83, %81 : vector<64x128xf32>
    %85 = vector.broadcast %70 : f32 to vector<64x128xf32>
    %86 = arith.mulf %85, %68 : vector<64x128xf32>
    %87 = arith.addf %84, %86 : vector<64x128xf32>
    %88 = vector.broadcast %71 : f32 to vector<64x128xf32>
    %89 = arith.mulf %88, %82 : vector<64x128xf32>
    %90 = arith.addf %87, %89 : vector<64x128xf32>
    %c1_i32_18 = arith.constant 1 : i32
    %91 = tpu.dynamic_rotate %90 by %c1_i32_18 dim 0 : vector<64x128xf32>, i32 -> vector<64x128xf32>
    %c63_i32_19 = arith.constant 63 : i32
    %92 = tpu.dynamic_rotate %90 by %c63_i32_19 dim 0 : vector<64x128xf32>, i32 -> vector<64x128xf32>
    %93 = arith.select %9, %92, %91 : vector<64x128xi1>, vector<64x128xf32>
    %94 = vector.broadcast %75 : f32 to vector<64x128xf32>
    %95 = arith.mulf %94, %81 : vector<64x128xf32>
    %96 = vector.broadcast %76 : f32 to vector<64x128xf32>
    %97 = arith.mulf %96, %68 : vector<64x128xf32>
    %98 = arith.addf %95, %97 : vector<64x128xf32>
    %99 = vector.broadcast %77 : f32 to vector<64x128xf32>
    %100 = arith.mulf %99, %82 : vector<64x128xf32>
    %101 = arith.addf %98, %100 : vector<64x128xf32>
    %c1_i32_20 = arith.constant 1 : i32
    %102 = tpu.dynamic_rotate %101 by %c1_i32_20 dim 0 : vector<64x128xf32>, i32 -> vector<64x128xf32>
    %c63_i32_21 = arith.constant 63 : i32
    %103 = tpu.dynamic_rotate %101 by %c63_i32_21 dim 0 : vector<64x128xf32>, i32 -> vector<64x128xf32>
    %104 = arith.select %11, %102, %103 : vector<64x128xi1>, vector<64x128xf32>
    %105 = arith.addf %93, %104 : vector<64x128xf32>
    %106 = vector.broadcast %72 : f32 to vector<64x128xf32>
    %107 = arith.mulf %106, %81 : vector<64x128xf32>
    %108 = vector.broadcast %73 : f32 to vector<64x128xf32>
    %109 = arith.mulf %108, %68 : vector<64x128xf32>
    %110 = arith.addf %107, %109 : vector<64x128xf32>
    %111 = vector.broadcast %74 : f32 to vector<64x128xf32>
    %112 = arith.mulf %111, %82 : vector<64x128xf32>
    %113 = arith.addf %110, %112 : vector<64x128xf32>
    %114 = arith.addf %105, %113 : vector<64x128xf32>
    %115 = vector.broadcast %78 : f32 to vector<64x128xf32>
    %116 = arith.addf %114, %115 : vector<64x128xf32>
    %cst_22 = arith.constant 0.00999999977 : f32
    %117 = vector.broadcast %cst_22 : f32 to vector<64x128xf32>
    %118 = arith.mulf %117, %116 : vector<64x128xf32>
    %119 = arith.maximumf %116, %118 : vector<64x128xf32>
    %c18 = arith.constant 18 : index
    %120 = memref.load %arg4[%c18] : memref<30xf32, #tpu.memory_space<smem>>
    %c19 = arith.constant 19 : index
    %121 = memref.load %arg4[%c19] : memref<30xf32, #tpu.memory_space<smem>>
    %c20 = arith.constant 20 : index
    %122 = memref.load %arg4[%c20] : memref<30xf32, #tpu.memory_space<smem>>
    %c21 = arith.constant 21 : index
    %123 = memref.load %arg4[%c21] : memref<30xf32, #tpu.memory_space<smem>>
    %c22 = arith.constant 22 : index
    %124 = memref.load %arg4[%c22] : memref<30xf32, #tpu.memory_space<smem>>
    %c23 = arith.constant 23 : index
    %125 = memref.load %arg4[%c23] : memref<30xf32, #tpu.memory_space<smem>>
    %c24 = arith.constant 24 : index
    %126 = memref.load %arg4[%c24] : memref<30xf32, #tpu.memory_space<smem>>
    %c25 = arith.constant 25 : index
    %127 = memref.load %arg4[%c25] : memref<30xf32, #tpu.memory_space<smem>>
    %c26 = arith.constant 26 : index
    %128 = memref.load %arg4[%c26] : memref<30xf32, #tpu.memory_space<smem>>
    %c29 = arith.constant 29 : index
    %129 = memref.load %arg4[%c29] : memref<30xf32, #tpu.memory_space<smem>>
    %c1_i32_23 = arith.constant 1 : i32
    %130 = tpu.dynamic_rotate %119 by %c1_i32_23 dim 1 : vector<64x128xf32>, i32 -> vector<64x128xf32>
    %c127_i32_24 = arith.constant 127 : i32
    %131 = tpu.dynamic_rotate %119 by %c127_i32_24 dim 1 : vector<64x128xf32>, i32 -> vector<64x128xf32>
    %132 = arith.select %15, %131, %130 : vector<64x128xi1>, vector<64x128xf32>
    %133 = arith.select %17, %130, %131 : vector<64x128xi1>, vector<64x128xf32>
    %134 = vector.broadcast %120 : f32 to vector<64x128xf32>
    %135 = arith.mulf %134, %132 : vector<64x128xf32>
    %136 = vector.broadcast %121 : f32 to vector<64x128xf32>
    %137 = arith.mulf %136, %119 : vector<64x128xf32>
    %138 = arith.addf %135, %137 : vector<64x128xf32>
    %139 = vector.broadcast %122 : f32 to vector<64x128xf32>
    %140 = arith.mulf %139, %133 : vector<64x128xf32>
    %141 = arith.addf %138, %140 : vector<64x128xf32>
    %c1_i32_25 = arith.constant 1 : i32
    %142 = tpu.dynamic_rotate %141 by %c1_i32_25 dim 0 : vector<64x128xf32>, i32 -> vector<64x128xf32>
    %c63_i32_26 = arith.constant 63 : i32
    %143 = tpu.dynamic_rotate %141 by %c63_i32_26 dim 0 : vector<64x128xf32>, i32 -> vector<64x128xf32>
    %144 = arith.select %9, %143, %142 : vector<64x128xi1>, vector<64x128xf32>
    %145 = vector.broadcast %126 : f32 to vector<64x128xf32>
    %146 = arith.mulf %145, %132 : vector<64x128xf32>
    %147 = vector.broadcast %127 : f32 to vector<64x128xf32>
    %148 = arith.mulf %147, %119 : vector<64x128xf32>
    %149 = arith.addf %146, %148 : vector<64x128xf32>
    %150 = vector.broadcast %128 : f32 to vector<64x128xf32>
    %151 = arith.mulf %150, %133 : vector<64x128xf32>
    %152 = arith.addf %149, %151 : vector<64x128xf32>
    %c1_i32_27 = arith.constant 1 : i32
    %153 = tpu.dynamic_rotate %152 by %c1_i32_27 dim 0 : vector<64x128xf32>, i32 -> vector<64x128xf32>
    %c63_i32_28 = arith.constant 63 : i32
    %154 = tpu.dynamic_rotate %152 by %c63_i32_28 dim 0 : vector<64x128xf32>, i32 -> vector<64x128xf32>
    %155 = arith.select %11, %153, %154 : vector<64x128xi1>, vector<64x128xf32>
    %156 = arith.addf %144, %155 : vector<64x128xf32>
    %157 = vector.broadcast %123 : f32 to vector<64x128xf32>
    %158 = arith.mulf %157, %132 : vector<64x128xf32>
    %159 = vector.broadcast %124 : f32 to vector<64x128xf32>
    %160 = arith.mulf %159, %119 : vector<64x128xf32>
    %161 = arith.addf %158, %160 : vector<64x128xf32>
    %162 = vector.broadcast %125 : f32 to vector<64x128xf32>
    %163 = arith.mulf %162, %133 : vector<64x128xf32>
    %164 = arith.addf %161, %163 : vector<64x128xf32>
    %165 = arith.addf %156, %164 : vector<64x128xf32>
    %166 = vector.broadcast %129 : f32 to vector<64x128xf32>
    %167 = arith.addf %165, %166 : vector<64x128xf32>
    %168 = vector.extract_strided_slice %167 {offsets = [0, 0], sizes = [64, 64], strides = [1, 1]} : vector<64x128xf32> to vector<64x64xf32>
    %c0_29 = arith.constant 0 : index
    %c0_30 = arith.constant 0 : index
    %c0_31 = arith.constant 0 : index
    %c0_32 = arith.constant 0 : index
    %169 = vector.load %arg5[%c0_29, %c0_30, %c0_31, %c0_32] : memref<2x1x64x64xf32, #tpu.memory_space<vmem>>, vector<1x1x64x64xf32>
    %170 = vector.shape_cast %169 : vector<1x1x64x64xf32> to vector<64x64xf32>
    %171 = vector.shape_cast %168 : vector<64x64xf32> to vector<1x1x64x64xf32>
    tpu.vector_store %arg5[%c0_29, %c0_30, %c0_31, %c0_32], %171 {strides = array<i32>} : memref<2x1x64x64xf32, #tpu.memory_space<vmem>>, vector<1x1x64x64xf32>,
    %172 = vector.extract_strided_slice %167 {offsets = [0, 64], sizes = [64, 64], strides = [1, 1]} : vector<64x128xf32> to vector<64x64xf32>
    %c1_33 = arith.constant 1 : index
    %c0_34 = arith.constant 0 : index
    %c0_35 = arith.constant 0 : index
    %c0_36 = arith.constant 0 : index
    %173 = vector.load %arg5[%c1_33, %c0_34, %c0_35, %c0_36] : memref<2x1x64x64xf32, #tpu.memory_space<vmem>>, vector<1x1x64x64xf32>
    %174 = vector.shape_cast %173 : vector<1x1x64x64xf32> to vector<64x64xf32>
    %175 = vector.shape_cast %172 : vector<64x64xf32> to vector<1x1x64x64xf32>
    tpu.vector_store %arg5[%c1_33, %c0_34, %c0_35, %c0_36], %175 {strides = array<i32>} : memref<2x1x64x64xf32, #tpu.memory_space<vmem>>, vector<1x1x64x64xf32>,
    return
  }
  func.func @transform_0(%arg0: i32) -> (i32, i32, i32) {
    %c0_i32 = arith.constant 0 : i32
    %c0_i32_0 = arith.constant 0 : i32
    %c0_i32_1 = arith.constant 0 : i32
    return %arg0, %c0_i32, %c0_i32_0 : i32, i32, i32
  }
  func.func @transform_1(%arg0: i32) -> (i32, i32) {
    %c0_i32 = arith.constant 0 : i32
    %c0_i32_0 = arith.constant 0 : i32
    %c0_i32_1 = arith.constant 0 : i32
    return %c0_i32, %c0_i32_0 : i32, i32
  }
  func.func @transform_2(%arg0: i32) -> (i32, i32) {
    %c0_i32 = arith.constant 0 : i32
    %c0_i32_0 = arith.constant 0 : i32
    %c0_i32_1 = arith.constant 0 : i32
    return %c0_i32, %c0_i32_0 : i32, i32
  }
  func.func @transform_3(%arg0: i32) -> i32 {
    %c0_i32 = arith.constant 0 : i32
    %c0_i32_0 = arith.constant 0 : i32
    return %c0_i32 : i32
  }
  func.func @transform_4(%arg0: i32) -> (i32, i32, i32, i32) {
    %c0_i32 = arith.constant 0 : i32
    %c0_i32_0 = arith.constant 0 : i32
    %c0_i32_1 = arith.constant 0 : i32
    %c0_i32_2 = arith.constant 0 : i32
    return %arg0, %c0_i32, %c0_i32_0, %c0_i32_1 : i32, i32, i32, i32
  }
}

</mosaic_0001>

<llo_original>
// kernel: tpu_custom_call.1
$region0: #{tpu_custom_call.1}
  #allocation0 [shape = 'u32[]', space=smem, size = 0x4, offset = 0x4, fixed_abs, tag = 'smem constant byte address 0x4 - core index']
  #allocation1 [shape = 'u32[72,128]{1,0:T(1,128)}', space=vmem, size = 0x9000, scoped, tag = 'internal scratch']
  %s0 = inlined_call_operand.vmem [shape: bf16[1,16,32], index: 0, kind: input, shape index: {}]
  %s1 = inlined_call_operand.vmem [shape: f32[64,16], index: 1, kind: input, shape index: {}]
  %s2 = inlined_call_operand.vmem [shape: bf16[32,128], index: 2, kind: input, shape index: {}]
  %s3 = inlined_call_operand.vmem [shape: f32[30], index: 3, kind: input, shape index: {}]
  %s4 = inlined_call_operand.hbm [shape: f32[2,1,64,64], index: 4, kind: output, shape index: {}]
  %s5 = sld [smem:[#allocation0]]
  $region30: #{tpu_custom_call.1} parent=0
    _
  %s7 = ssub.s32 1, %s5
  %s8 = scalar_select 0, %s7, %s5
  $region1: #{tpu_custom_call.1} parent=0
    #allocation2 [shape = 'u8[512]{0}', space=smem, size = 0x200, scoped, tag = 'input window, operand 3, single buffered']
    #allocation3 [shape = 's32[1]{0}', space=sflag, size = 0x4, scoped, tag = 'scoped memory for tpu_custom_call.1']
    #allocation4 [shape = 's32[1]{0}', space=sflag, size = 0x4, scoped, tag = 'scoped memory for tpu_custom_call.1']
    #allocation5 [shape = 'u8[65536]{0}', space=vmem, size = 0x10000, scoped, tag = 'output window, operand 0, single buffered']
    %9 = vsyncpa [#allocation4], 0
    %10 = vsyncpa [#allocation3], 0
    // Predicated region
    $region2: #{tpu_custom_call.1} parent=1 // pred_check
      _
    $region3: #{tpu_custom_call.1} parent=1 // pred_check_branch
      %12 = sbr.rel (0) target = $region5
    $region4: #{tpu_custom_call.1} parent=1 // pred_region
      _
    $region5: #{tpu_custom_call.1} parent=1 // pred_fallthru
      _
    // Predicated region
    $region6: #{tpu_custom_call.1} parent=1 // pred_check
      _
    $region7: #{tpu_custom_call.1} parent=1 // pred_check_branch
      %14 = sbr.rel (0) target = $region9
    $region8: #{tpu_custom_call.1} parent=1 // pred_region
      _
    $region9: #{tpu_custom_call.1} parent=1 // pred_fallthru
      _
    // Predicated region
    $region10: #{tpu_custom_call.1} parent=1 // pred_check
      _
    $region11: #{tpu_custom_call.1} parent=1 // pred_check_branch
      %16 = sbr.rel (0) target = $region13
    $region12: #{tpu_custom_call.1} parent=1 // pred_region
      _
    $region13: #{tpu_custom_call.1} parent=1 // pred_fallthru
      _
    // Predicated region
    $region14: #{tpu_custom_call.1} parent=1 // pred_check
      _
    $region15: #{tpu_custom_call.1} parent=1 // pred_check_branch
      %18 = sbr.rel (0) target = $region17
    $region16: #{tpu_custom_call.1} parent=1 // pred_region
      %20 = vsyncadd [#allocation4], 0
      %s22 = sshll.u32 %s3, 4
      %s23 = int_to_ptr.vmem [resolvable:$true] %s22
      %25 = dma.vmem_to_smem %s23, 16, [#allocation2], [#allocation4]
    $region17: #{tpu_custom_call.1} parent=1 // pred_fallthru
      _
    // Predicated region
    $region18: #{tpu_custom_call.1} parent=1 // pred_check
      _
    $region19: #{tpu_custom_call.1} parent=1 // pred_check_branch
      %27 = sbr.rel (0) target = $region21
    $region20: #{tpu_custom_call.1} parent=1 // pred_region
      %29 = dma.done [#allocation4], 16
    $region21: #{tpu_custom_call.1} parent=1 // pred_fallthru
      _
    %30 = sfence
    %v32 = vld [vmem:[%s0] sm:$0xf]
    %v33 = vld [vmem:[%s0 + $0x4] sm:$0xf]
    %v34 = vld [vmem:[%s2] sm:$0xf]
    %v35 = vld [vmem:[%s2 + $0x4] sm:$0xf]
    %v36 = vld [vmem:[%s2 + $0x8] sm:$0xf]
    %v37 = vld [vmem:[%s2 + $0xc] sm:$0xf]
    %v40 = vunpack.c.l.b16 %v32
    %v41 = vunpack.c.l.b16 %v33
    %v42 = vpack.c.b16 %v41, %v40
    %v47 = vunpack.c.l.b16 %v34
    %v48 = vunpack.c.l.b16 %v35
    %v49 = vunpack.c.l.b16 %v36
    %v50 = vunpack.c.l.b16 %v37
    %v51 = vpack.c.b16 %v48, %v47
    %v52 = vpack.c.b16 %v50, %v49
    %vm55 = vcmask 261120
    %v57 = vsel %vm55, %v42, 0
    %59 = vmatpush.bf16.msra.mxu0 0
    %60 = vmatpush.bf16.msra.mxu0 0
    %61 = vmatpush.bf16.msra.mxu0 0
    %62 = vmatpush.bf16.msra.mxu0 0
    %63 = vmatpush.bf16.msra.mxu0 0
    %64 = vmatpush.bf16.msra.mxu0 0
    %65 = vmatpush.bf16.msra.mxu0 %v52
    %66 = vmatpush.bf16.msra.mxu0 %v51
    %67 = vmatmul.bf16.gmra.mxu0 %v57
    %v68 = vpop.f32.mrf.mxu0
    %v69 = vadd.f32 0.0, %v68
    %v70 = vpop.f32.mrf.mxu0
    %v71 = vadd.f32 0.0, %v70
    %72 = vdwg.mxu0
    %v73 = vld [vmem:[%s1] sm:$0xff]
    %v74 = vld [vmem:[%s1 + $0x8] sm:$0xff]
    %v75 = vld [vmem:[%s1 + $0x10] sm:$0xff]
    %v76 = vld [vmem:[%s1 + $0x18] sm:$0xff]
    %v77 = vld [vmem:[%s1 + $0x20] sm:$0xff]
    %v78 = vld [vmem:[%s1 + $0x28] sm:$0xff]
    %v79 = vld [vmem:[%s1 + $0x30] sm:$0xff]
    %v80 = vld [vmem:[%s1 + $0x38] sm:$0xff]
    %vm81 = vcmask 130048
    %v83 = vsel %vm81, %v73, 0
    %v86 = vsel %vm81, %v74, 0
    %v89 = vsel %vm81, %v75, 0
    %v92 = vsel %vm81, %v76, 0
    %v95 = vsel %vm81, %v77, 0
    %v98 = vsel %vm81, %v78, 0
    %v101 = vsel %vm81, %v79, 0
    %v104 = vsel %vm81, %v80, 0
    %106 = vmatpush.msra.mxu0 0.0
    %107 = vmatpush.msra.mxu0 0.0
    %108 = vmatpush.msra.mxu0 0.0
    %109 = vmatpush.msra.mxu0 0.0
    %110 = vmatpush.msra.mxu0 0.0
    %111 = vmatpush.msra.mxu0 0.0
    %112 = vmatpush.msra.mxu0 0.0
    %113 = vmatpush.msra.mxu0 0.0
    %114 = vmatpush.msra.mxu0 0.0
    %115 = vmatpush.msra.mxu0 0.0
    %116 = vmatpush.msra.mxu0 0.0
    %117 = vmatpush.msra.mxu0 0.0
    %118 = vmatpush.msra.mxu0 0.0
    %119 = vmatpush.msra.mxu0 0.0
    %120 = vmatpush.msra.mxu0 %v71
    %121 = vmatpush.msra.mxu0 %v69
    %122 = vmatmul.f32.gmra.mxu0 %v83
    %v123 = vpop.f32.mrf.mxu0
    %v124 = vadd.f32 0.0, %v123
    %125 = vmatmul.f32.gmra.mxu0 %v86
    %v126 = vpop.f32.mrf.mxu0
    %v127 = vadd.f32 0.0, %v126
    %128 = vmatmul.f32.gmra.mxu0 %v89
    %v129 = vpop.f32.mrf.mxu0
    %v130 = vadd.f32 0.0, %v129
    %131 = vmatmul.f32.gmra.mxu0 %v92
    %v132 = vpop.f32.mrf.mxu0
    %v133 = vadd.f32 0.0, %v132
    %134 = vmatmul.f32.gmra.mxu0 %v95
    %v135 = vpop.f32.mrf.mxu0
    %v136 = vadd.f32 0.0, %v135
    %137 = vmatmul.f32.gmra.mxu0 %v98
    %v138 = vpop.f32.mrf.mxu0
    %v139 = vadd.f32 0.0, %v138
    %140 = vmatmul.f32.gmra.mxu0 %v101
    %v141 = vpop.f32.mrf.mxu0
    %v142 = vadd.f32 0.0, %v141
    %143 = vmatmul.f32.gmra.mxu0 %v104
    %v144 = vpop.f32.mrf.mxu0
    %v145 = vadd.f32 0.0, %v144
    %146 = vdwg.mxu0
    %v147 = vlaneseq
    %v148 = vshrl.u32 %v147, 7
    %v149 = vadd.s32 %v148, 8
    %v150 = vadd.s32 %v148, 16
    %v151 = vadd.s32 %v148, 24
    %v152 = vadd.s32 %v148, 32
    %v153 = vadd.s32 %v148, 40
    %v154 = vadd.s32 %v148, 48
    %v155 = vadd.s32 %v148, 56
    %v156 = vlaneseq
    %v157 = vand.u32 %v156, 127
    %vm158 = vcmp.eq.s32.totalorder %v148, 0
    %vm159 = vcmp.eq.s32.totalorder %v149, 0
    %vm160 = vcmp.eq.s32.totalorder %v150, 0
    %vm161 = vcmp.eq.s32.totalorder %v151, 0
    %vm162 = vcmp.eq.s32.totalorder %v152, 0
    %vm163 = vcmp.eq.s32.totalorder %v153, 0
    %vm164 = vcmp.eq.s32.totalorder %v154, 0
    %vm165 = vcmp.eq.s32.totalorder %v155, 0
    %vm166 = vcmp.eq.s32.totalorder %v148, 63
    %vm167 = vcmp.eq.s32.totalorder %v149, 63
    %vm168 = vcmp.eq.s32.totalorder %v150, 63
    %vm169 = vcmp.eq.s32.totalorder %v151, 63
    %vm170 = vcmp.eq.s32.totalorder %v152, 63
    %vm171 = vcmp.eq.s32.totalorder %v153, 63
    %vm172 = vcmp.eq.s32.totalorder %v154, 63
    %vm173 = vcmp.eq.s32.totalorder %v155, 63
    %v174 = vand.u32 %v157, 63
    %vm175 = vcmp.eq.s32.totalorder %v174, 0
    %vm176 = vcmp.eq.s32.totalorder %v174, 63
    %s177 = sld [smem:[#allocation2]]
    %s178 = sld [smem:[#allocation2 + $0x1]]
    %s179 = sld [smem:[#allocation2 + $0x2]]
    %s180 = sld [smem:[#allocation2 + $0x3]]
    %s181 = sld [smem:[#allocation2 + $0x4]]
    %s182 = sld [smem:[#allocation2 + $0x5]]
    %s183 = sld [smem:[#allocation2 + $0x6]]
    %s184 = sld [smem:[#allocation2 + $0x7]]
    %s185 = sld [smem:[#allocation2 + $0x8]]
    %s186 = sld [smem:[#allocation2 + $0x1b]]
    %187 = vrot.lane.b32.xlu0 %v124, 1
    %v188 = vpop.permute.xlu0 %187
    %189 = vrot.lane.b32.xlu0 %v127, 1
    %v190 = vpop.permute.xlu0 %189
    %191 = vrot.lane.b32.xlu0 %v130, 1
    %v192 = vpop.permute.xlu0 %191
    %193 = vrot.lane.b32.xlu0 %v133, 1
    %v194 = vpop.permute.xlu0 %193
    %195 = vrot.lane.b32.xlu0 %v136, 1
    %v196 = vpop.permute.xlu0 %195
    %197 = vrot.lane.b32.xlu0 %v139, 1
    %v198 = vpop.permute.xlu0 %197
    %199 = vrot.lane.b32.xlu0 %v142, 1
    %v200 = vpop.permute.xlu0 %199
    %201 = vrot.lane.b32.xlu0 %v145, 1
    %v202 = vpop.permute.xlu0 %201
    %203 = vrot.lane.b32.xlu0 %v124, 127
    %v204 = vpop.permute.xlu0 %203
    %205 = vrot.lane.b32.xlu0 %v127, 127
    %v206 = vpop.permute.xlu0 %205
    %207 = vrot.lane.b32.xlu0 %v130, 127
    %v208 = vpop.permute.xlu0 %207
    %209 = vrot.lane.b32.xlu0 %v133, 127
    %v210 = vpop.permute.xlu0 %209
    %211 = vrot.lane.b32.xlu0 %v136, 127
    %v212 = vpop.permute.xlu0 %211
    %213 = vrot.lane.b32.xlu0 %v139, 127
    %v214 = vpop.permute.xlu0 %213
    %215 = vrot.lane.b32.xlu0 %v142, 127
    %v216 = vpop.permute.xlu0 %215
    %217 = vrot.lane.b32.xlu0 %v145, 127
    %v218 = vpop.permute.xlu0 %217
    %v219 = vsel %vm175, %v204, %v188
    %v220 = vsel %vm175, %v206, %v190
    %v221 = vsel %vm175, %v208, %v192
    %v222 = vsel %vm175, %v210, %v194
    %v223 = vsel %vm175, %v212, %v196
    %v224 = vsel %vm175, %v214, %v198
    %v225 = vsel %vm175, %v216, %v200
    %v226 = vsel %vm175, %v218, %v202
    %v227 = vsel %vm176, %v188, %v204
    %v228 = vsel %vm176, %v190, %v206
    %v229 = vsel %vm176, %v192, %v208
    %v230 = vsel %vm176, %v194, %v210
    %v231 = vsel %vm176, %v196, %v212
    %v232 = vsel %vm176, %v198, %v214
    %v233 = vsel %vm176, %v200, %v216
    %v234 = vsel %vm176, %v202, %v218
    %v235 = vstv %s177
    %v236 = vmul.f32 %v235, %v219
    %v237 = vmul.f32 %v235, %v220
    %v238 = vmul.f32 %v235, %v221
    %v239 = vmul.f32 %v235, %v222
    %v240 = vmul.f32 %v235, %v223
    %v241 = vmul.f32 %v235, %v224
    %v242 = vmul.f32 %v235, %v225
    %v243 = vmul.f32 %v235, %v226
    %v244 = vstv %s178
    %v245 = vmul.f32 %v244, %v124
    %v246 = vmul.f32 %v244, %v127
    %v247 = vmul.f32 %v244, %v130
    %v248 = vmul.f32 %v244, %v133
    %v249 = vmul.f32 %v244, %v136
    %v250 = vmul.f32 %v244, %v139
    %v251 = vmul.f32 %v244, %v142
    %v252 = vmul.f32 %v244, %v145
    %v253 = vadd.f32 %v236, %v245
    %v254 = vadd.f32 %v237, %v246
    %v255 = vadd.f32 %v238, %v247
    %v256 = vadd.f32 %v239, %v248
    %v257 = vadd.f32 %v240, %v249
    %v258 = vadd.f32 %v241, %v250
    %v259 = vadd.f32 %v242, %v251
    %v260 = vadd.f32 %v243, %v252
    %v261 = vstv %s179
    %v262 = vmul.f32 %v261, %v227
    %v263 = vmul.f32 %v261, %v228
    %v264 = vmul.f32 %v261, %v229
    %v265 = vmul.f32 %v261, %v230
    %v266 = vmul.f32 %v261, %v231
    %v267 = vmul.f32 %v261, %v232
    %v268 = vmul.f32 %v261, %v233
    %v269 = vmul.f32 %v261, %v234
    %v270 = vadd.f32 %v253, %v262
    %v271 = vadd.f32 %v254, %v263
    %v272 = vadd.f32 %v255, %v264
    %v273 = vadd.f32 %v256, %v265
    %v274 = vadd.f32 %v257, %v266
    %v275 = vadd.f32 %v258, %v267
    %v276 = vadd.f32 %v259, %v268
    %v277 = vadd.f32 %v260, %v269
    %v278 = vrot.slane %v270, 7
    %v279 = vrot.slane %v271, 7
    %v280 = vrot.slane %v272, 7
    %v281 = vrot.slane %v273, 7
    %v282 = vrot.slane %v274, 7
    %v283 = vrot.slane %v275, 7
    %v284 = vrot.slane %v276, 7
    %v285 = vrot.slane %v277, 7
    %vm286 = vcmp.lt.s32.totalorder %v148, 1
    %v287 = vsel %vm286, %v284, %v285
    %v288 = vsel %vm286, %v283, %v284
    %v289 = vsel %vm286, %v282, %v283
    %v290 = vsel %vm286, %v281, %v282
    %v291 = vsel %vm286, %v280, %v281
    %v292 = vsel %vm286, %v279, %v280
    %v293 = vsel %vm286, %v278, %v279
    %v294 = vsel %vm286, %v285, %v278
    %v295 = vrot.slane %v270, 1
    %v296 = vrot.slane %v271, 1
    %v297 = vrot.slane %v272, 1
    %v298 = vrot.slane %v273, 1
    %v299 = vrot.slane %v274, 1
    %v300 = vrot.slane %v275, 1
    %v301 = vrot.slane %v276, 1
    %v302 = vrot.slane %v277, 1
    %vm303 = vcmp.lt.s32.totalorder %v148, 7
    %v304 = vsel %vm303, %v301, %v302
    %v305 = vsel %vm303, %v300, %v301
    %v306 = vsel %vm303, %v299, %v300
    %v307 = vsel %vm303, %v298, %v299
    %v308 = vsel %vm303, %v297, %v298
    %v309 = vsel %vm303, %v296, %v297
    %v310 = vsel %vm303, %v295, %v296
    %v311 = vsel %vm303, %v302, %v295
    %v312 = vsel %vm158, %v310, %v294
    %v313 = vsel %vm159, %v309, %v293
    %v314 = vsel %vm160, %v308, %v292
    %v315 = vsel %vm161, %v307, %v291
    %v316 = vsel %vm162, %v306, %v290
    %v317 = vsel %vm163, %v305, %v289
    %v318 = vsel %vm164, %v304, %v288
    %v319 = vsel %vm165, %v311, %v287
    %v320 = vstv %s183
    %v321 = vmul.f32 %v320, %v219
    %v322 = vmul.f32 %v320, %v220
    %v323 = vmul.f32 %v320, %v221
    %v324 = vmul.f32 %v320, %v222
    %v325 = vmul.f32 %v320, %v223
    %v326 = vmul.f32 %v320, %v224
    %v327 = vmul.f32 %v320, %v225
    %v328 = vmul.f32 %v320, %v226
    %v329 = vstv %s184
    %v330 = vmul.f32 %v329, %v124
    %v331 = vmul.f32 %v329, %v127
    %v332 = vmul.f32 %v329, %v130
    %v333 = vmul.f32 %v329, %v133
    %v334 = vmul.f32 %v329, %v136
    %v335 = vmul.f32 %v329, %v139
    %v336 = vmul.f32 %v329, %v142
    %v337 = vmul.f32 %v329, %v145
    %v338 = vadd.f32 %v321, %v330
    %v339 = vadd.f32 %v322, %v331
    %v340 = vadd.f32 %v323, %v332
    %v341 = vadd.f32 %v324, %v333
    %v342 = vadd.f32 %v325, %v334
    %v343 = vadd.f32 %v326, %v335
    %v344 = vadd.f32 %v327, %v336
    %v345 = vadd.f32 %v328, %v337
    %v346 = vstv %s185
    %v347 = vmul.f32 %v346, %v227
    %v348 = vmul.f32 %v346, %v228
    %v349 = vmul.f32 %v346, %v229
    %v350 = vmul.f32 %v346, %v230
    %v351 = vmul.f32 %v346, %v231
    %v352 = vmul.f32 %v346, %v232
    %v353 = vmul.f32 %v346, %v233
    %v354 = vmul.f32 %v346, %v234
    %v355 = vadd.f32 %v338, %v347
    %v356 = vadd.f32 %v339, %v348
    %v357 = vadd.f32 %v340, %v349
    %v358 = vadd.f32 %v341, %v350
    %v359 = vadd.f32 %v342, %v351
    %v360 = vadd.f32 %v343, %v352
    %v361 = vadd.f32 %v344, %v353
    %v362 = vadd.f32 %v345, %v354
    %v363 = vrot.slane %v355, 7
    %v364 = vrot.slane %v356, 7
    %v365 = vrot.slane %v357, 7
    %v366 = vrot.slane %v358, 7
    %v367 = vrot.slane %v359, 7
    %v368 = vrot.slane %v360, 7
    %v369 = vrot.slane %v361, 7
    %v370 = vrot.slane %v362, 7
    %v371 = vsel %vm286, %v369, %v370
    %v372 = vsel %vm286, %v368, %v369
    %v373 = vsel %vm286, %v367, %v368
    %v374 = vsel %vm286, %v366, %v367
    %v375 = vsel %vm286, %v365, %v366
    %v376 = vsel %vm286, %v364, %v365
    %v377 = vsel %vm286, %v363, %v364
    %v378 = vsel %vm286, %v370, %v363
    %v379 = vrot.slane %v355, 1
    %v380 = vrot.slane %v356, 1
    %v381 = vrot.slane %v357, 1
    %v382 = vrot.slane %v358, 1
    %v383 = vrot.slane %v359, 1
    %v384 = vrot.slane %v360, 1
    %v385 = vrot.slane %v361, 1
    %v386 = vrot.slane %v362, 1
    %v387 = vsel %vm303, %v385, %v386
    %v388 = vsel %vm303, %v384, %v385
    %v389 = vsel %vm303, %v383, %v384
    %v390 = vsel %vm303, %v382, %v383
    %v391 = vsel %vm303, %v381, %v382
    %v392 = vsel %vm303, %v380, %v381
    %v393 = vsel %vm303, %v379, %v380
    %v394 = vsel %vm303, %v386, %v379
    %v395 = vsel %vm166, %v378, %v393
    %v396 = vsel %vm167, %v377, %v392
    %v397 = vsel %vm168, %v376, %v391
    %v398 = vsel %vm169, %v375, %v390
    %v399 = vsel %vm170, %v374, %v389
    %v400 = vsel %vm171, %v373, %v388
    %v401 = vsel %vm172, %v372, %v387
    %v402 = vsel %vm173, %v371, %v394
    %v403 = vadd.f32 %v312, %v395
    %v404 = vadd.f32 %v313, %v396
    %v405 = vadd.f32 %v314, %v397
    %v406 = vadd.f32 %v315, %v398
    %v407 = vadd.f32 %v316, %v399
    %v408 = vadd.f32 %v317, %v400
    %v409 = vadd.f32 %v318, %v401
    %v410 = vadd.f32 %v319, %v402
    %v411 = vstv %s180
    %v412 = vmul.f32 %v411, %v219
    %v413 = vmul.f32 %v411, %v220
    %v414 = vmul.f32 %v411, %v221
    %v415 = vmul.f32 %v411, %v222
    %v416 = vmul.f32 %v411, %v223
    %v417 = vmul.f32 %v411, %v224
    %v418 = vmul.f32 %v411, %v225
    %v419 = vmul.f32 %v411, %v226
    %v420 = vstv %s181
    %v421 = vmul.f32 %v420, %v124
    %v422 = vmul.f32 %v420, %v127
    %v423 = vmul.f32 %v420, %v130
    %v424 = vmul.f32 %v420, %v133
    %v425 = vmul.f32 %v420, %v136
    %v426 = vmul.f32 %v420, %v139
    %v427 = vmul.f32 %v420, %v142
    %v428 = vmul.f32 %v420, %v145
    %v429 = vadd.f32 %v412, %v421
    %v430 = vadd.f32 %v413, %v422
    %v431 = vadd.f32 %v414, %v423
    %v432 = vadd.f32 %v415, %v424
    %v433 = vadd.f32 %v416, %v425
    %v434 = vadd.f32 %v417, %v426
    %v435 = vadd.f32 %v418, %v427
    %v436 = vadd.f32 %v419, %v428
    %v437 = vstv %s182
    %v438 = vmul.f32 %v437, %v227
    %v439 = vmul.f32 %v437, %v228
    %v440 = vmul.f32 %v437, %v229
    %v441 = vmul.f32 %v437, %v230
    %v442 = vmul.f32 %v437, %v231
    %v443 = vmul.f32 %v437, %v232
    %v444 = vmul.f32 %v437, %v233
    %v445 = vmul.f32 %v437, %v234
    %v446 = vadd.f32 %v429, %v438
    %v447 = vadd.f32 %v430, %v439
    %v448 = vadd.f32 %v431, %v440
    %v449 = vadd.f32 %v432, %v441
    %v450 = vadd.f32 %v433, %v442
    %v451 = vadd.f32 %v434, %v443
    %v452 = vadd.f32 %v435, %v444
    %v453 = vadd.f32 %v436, %v445
    %v454 = vadd.f32 %v403, %v446
    %v455 = vadd.f32 %v404, %v447
    %v456 = vadd.f32 %v405, %v448
    %v457 = vadd.f32 %v406, %v449
    %v458 = vadd.f32 %v407, %v450
    %v459 = vadd.f32 %v408, %v451
    %v460 = vadd.f32 %v409, %v452
    %v461 = vadd.f32 %v410, %v453
    %v462 = vstv %s186
    %v463 = vadd.f32 %v454, %v462
    %v464 = vadd.f32 %v455, %v462
    %v465 = vadd.f32 %v456, %v462
    %v466 = vadd.f32 %v457, %v462
    %v467 = vadd.f32 %v458, %v462
    %v468 = vadd.f32 %v459, %v462
    %v469 = vadd.f32 %v460, %v462
    %v470 = vadd.f32 %v461, %v462
    %v471 = vmul.f32 %v463, 0.01
    %v472 = vmul.f32 %v464, 0.01
    %v473 = vmul.f32 %v465, 0.01
    %v474 = vmul.f32 %v466, 0.01
    %v475 = vmul.f32 %v467, 0.01
    %v476 = vmul.f32 %v468, 0.01
    %v477 = vmul.f32 %v469, 0.01
    %v478 = vmul.f32 %v470, 0.01
    %v479 = vmax.f32 %v463, %v471
    %v480 = vmax.f32 %v464, %v472
    %v481 = vmax.f32 %v465, %v473
    %v482 = vmax.f32 %v466, %v474
    %v483 = vmax.f32 %v467, %v475
    %v484 = vmax.f32 %v468, %v476
    %v485 = vmax.f32 %v469, %v477
    %v486 = vmax.f32 %v470, %v478
    %s487 = sld [smem:[#allocation2 + $0x9]]
    %s488 = sld [smem:[#allocation2 + $0xa]]
    %s489 = sld [smem:[#allocation2 + $0xb]]
    %s490 = sld [smem:[#allocation2 + $0xc]]
    %s491 = sld [smem:[#allocation2 + $0xd]]
    %s492 = sld [smem:[#allocation2 + $0xe]]
    %s493 = sld [smem:[#allocation2 + $0xf]]
    %s494 = sld [smem:[#allocation2 + $0x10]]
    %s495 = sld [smem:[#allocation2 + $0x11]]
    %s496 = sld [smem:[#allocation2 + $0x1c]]
    %497 = vrot.lane.b32.xlu0 %v479, 1
    %v498 = vpop.permute.xlu0 %497
    %499 = vrot.lane.b32.xlu0 %v480, 1
    %v500 = vpop.permute.xlu0 %499
    %501 = vrot.lane.b32.xlu0 %v481, 1
    %v502 = vpop.permute.xlu0 %501
    %503 = vrot.lane.b32.xlu0 %v482, 1
    %v504 = vpop.permute.xlu0 %503
    %505 = vrot.lane.b32.xlu0 %v483, 1
    %v506 = vpop.permute.xlu0 %505
    %507 = vrot.lane.b32.xlu0 %v484, 1
    %v508 = vpop.permute.xlu0 %507
    %509 = vrot.lane.b32.xlu0 %v485, 1
    %v510 = vpop.permute.xlu0 %509
    %511 = vrot.lane.b32.xlu0 %v486, 1
    %v512 = vpop.permute.xlu0 %511
    %513 = vrot.lane.b32.xlu0 %v479, 127
    %v514 = vpop.permute.xlu0 %513
    %515 = vrot.lane.b32.xlu0 %v480, 127
    %v516 = vpop.permute.xlu0 %515
    %517 = vrot.lane.b32.xlu0 %v481, 127
    %v518 = vpop.permute.xlu0 %517
    %519 = vrot.lane.b32.xlu0 %v482, 127
    %v520 = vpop.permute.xlu0 %519
    %521 = vrot.lane.b32.xlu0 %v483, 127
    %v522 = vpop.permute.xlu0 %521
    %523 = vrot.lane.b32.xlu0 %v484, 127
    %v524 = vpop.permute.xlu0 %523
    %525 = vrot.lane.b32.xlu0 %v485, 127
    %v526 = vpop.permute.xlu0 %525
    %527 = vrot.lane.b32.xlu0 %v486, 127
    %v528 = vpop.permute.xlu0 %527
    %v529 = vsel %vm175, %v514, %v498
    %v530 = vsel %vm175, %v516, %v500
    %v531 = vsel %vm175, %v518, %v502
    %v532 = vsel %vm175, %v520, %v504
    %v533 = vsel %vm175, %v522, %v506
    %v534 = vsel %vm175, %v524, %v508
    %v535 = vsel %vm175, %v526, %v510
    %v536 = vsel %vm175, %v528, %v512
    %v537 = vsel %vm176, %v498, %v514
    %v538 = vsel %vm176, %v500, %v516
    %v539 = vsel %vm176, %v502, %v518
    %v540 = vsel %vm176, %v504, %v520
    %v541 = vsel %vm176, %v506, %v522
    %v542 = vsel %vm176, %v508, %v524
    %v543 = vsel %vm176, %v510, %v526
    %v544 = vsel %vm176, %v512, %v528
    %v545 = vstv %s487
    %v546 = vmul.f32 %v545, %v529
    %v547 = vmul.f32 %v545, %v530
    %v548 = vmul.f32 %v545, %v531
    %v549 = vmul.f32 %v545, %v532
    %v550 = vmul.f32 %v545, %v533
    %v551 = vmul.f32 %v545, %v534
    %v552 = vmul.f32 %v545, %v535
    %v553 = vmul.f32 %v545, %v536
    %v554 = vstv %s488
    %v555 = vmul.f32 %v554, %v479
    %v556 = vmul.f32 %v554, %v480
    %v557 = vmul.f32 %v554, %v481
    %v558 = vmul.f32 %v554, %v482
    %v559 = vmul.f32 %v554, %v483
    %v560 = vmul.f32 %v554, %v484
    %v561 = vmul.f32 %v554, %v485
    %v562 = vmul.f32 %v554, %v486
    %v563 = vadd.f32 %v546, %v555
    %v564 = vadd.f32 %v547, %v556
    %v565 = vadd.f32 %v548, %v557
    %v566 = vadd.f32 %v549, %v558
    %v567 = vadd.f32 %v550, %v559
    %v568 = vadd.f32 %v551, %v560
    %v569 = vadd.f32 %v552, %v561
    %v570 = vadd.f32 %v553, %v562
    %v571 = vstv %s489
    %v572 = vmul.f32 %v571, %v537
    %v573 = vmul.f32 %v571, %v538
    %v574 = vmul.f32 %v571, %v539
    %v575 = vmul.f32 %v571, %v540
    %v576 = vmul.f32 %v571, %v541
    %v577 = vmul.f32 %v571, %v542
    %v578 = vmul.f32 %v571, %v543
    %v579 = vmul.f32 %v571, %v544
    %v580 = vadd.f32 %v563, %v572
    %v581 = vadd.f32 %v564, %v573
    %v582 = vadd.f32 %v565, %v574
    %v583 = vadd.f32 %v566, %v575
    %v584 = vadd.f32 %v567, %v576
    %v585 = vadd.f32 %v568, %v577
    %v586 = vadd.f32 %v569, %v578
    %v587 = vadd.f32 %v570, %v579
    %v588 = vrot.slane %v580, 7
    %v589 = vrot.slane %v581, 7
    %v590 = vrot.slane %v582, 7
    %v591 = vrot.slane %v583, 7
    %v592 = vrot.slane %v584, 7
    %v593 = vrot.slane %v585, 7
    %v594 = vrot.slane %v586, 7
    %v595 = vrot.slane %v587, 7
    %v596 = vsel %vm286, %v594, %v595
    %v597 = vsel %vm286, %v593, %v594
    %v598 = vsel %vm286, %v592, %v593
    %v599 = vsel %vm286, %v591, %v592
    %v600 = vsel %vm286, %v590, %v591
    %v601 = vsel %vm286, %v589, %v590
    %v602 = vsel %vm286, %v588, %v589
    %v603 = vsel %vm286, %v595, %v588
    %v604 = vrot.slane %v580, 1
    %v605 = vrot.slane %v581, 1
    %v606 = vrot.slane %v582, 1
    %v607 = vrot.slane %v583, 1
    %v608 = vrot.slane %v584, 1
    %v609 = vrot.slane %v585, 1
    %v610 = vrot.slane %v586, 1
    %v611 = vrot.slane %v587, 1
    %v612 = vsel %vm303, %v610, %v611
    %v613 = vsel %vm303, %v609, %v610
    %v614 = vsel %vm303, %v608, %v609
    %v615 = vsel %vm303, %v607, %v608
    %v616 = vsel %vm303, %v606, %v607
    %v617 = vsel %vm303, %v605, %v606
    %v618 = vsel %vm303, %v604, %v605
    %v619 = vsel %vm303, %v611, %v604
    %v620 = vsel %vm158, %v618, %v603
    %v621 = vsel %vm159, %v617, %v602
    %v622 = vsel %vm160, %v616, %v601
    %v623 = vsel %vm161, %v615, %v600
    %v624 = vsel %vm162, %v614, %v599
    %v625 = vsel %vm163, %v613, %v598
    %v626 = vsel %vm164, %v612, %v597
    %v627 = vsel %vm165, %v619, %v596
    %v628 = vstv %s493
    %v629 = vmul.f32 %v628, %v529
    %v630 = vmul.f32 %v628, %v530
    %v631 = vmul.f32 %v628, %v531
    %v632 = vmul.f32 %v628, %v532
    %v633 = vmul.f32 %v628, %v533
    %v634 = vmul.f32 %v628, %v534
    %v635 = vmul.f32 %v628, %v535
    %v636 = vmul.f32 %v628, %v536
    %v637 = vstv %s494
    %v638 = vmul.f32 %v637, %v479
    %v639 = vmul.f32 %v637, %v480
    %v640 = vmul.f32 %v637, %v481
    %v641 = vmul.f32 %v637, %v482
    %v642 = vmul.f32 %v637, %v483
    %v643 = vmul.f32 %v637, %v484
    %v644 = vmul.f32 %v637, %v485
    %v645 = vmul.f32 %v637, %v486
    %v646 = vadd.f32 %v629, %v638
    %v647 = vadd.f32 %v630, %v639
    %v648 = vadd.f32 %v631, %v640
    %v649 = vadd.f32 %v632, %v641
    %v650 = vadd.f32 %v633, %v642
    %v651 = vadd.f32 %v634, %v643
    %v652 = vadd.f32 %v635, %v644
    %v653 = vadd.f32 %v636, %v645
    %v654 = vstv %s495
    %v655 = vmul.f32 %v654, %v537
    %v656 = vmul.f32 %v654, %v538
    %v657 = vmul.f32 %v654, %v539
    %v658 = vmul.f32 %v654, %v540
    %v659 = vmul.f32 %v654, %v541
    %v660 = vmul.f32 %v654, %v542
    %v661 = vmul.f32 %v654, %v543
    %v662 = vmul.f32 %v654, %v544
    %v663 = vadd.f32 %v646, %v655
    %v664 = vadd.f32 %v647, %v656
    %v665 = vadd.f32 %v648, %v657
    %v666 = vadd.f32 %v649, %v658
    %v667 = vadd.f32 %v650, %v659
    %v668 = vadd.f32 %v651, %v660
    %v669 = vadd.f32 %v652, %v661
    %v670 = vadd.f32 %v653, %v662
    %v671 = vrot.slane %v663, 7
    %v672 = vrot.slane %v664, 7
    %v673 = vrot.slane %v665, 7
    %v674 = vrot.slane %v666, 7
    %v675 = vrot.slane %v667, 7
    %v676 = vrot.slane %v668, 7
    %v677 = vrot.slane %v669, 7
    %v678 = vrot.slane %v670, 7
    %v679 = vsel %vm286, %v677, %v678
    %v680 = vsel %vm286, %v676, %v677
    %v681 = vsel %vm286, %v675, %v676
    %v682 = vsel %vm286, %v674, %v675
    %v683 = vsel %vm286, %v673, %v674
    %v684 = vsel %vm286, %v672, %v673
    %v685 = vsel %vm286, %v671, %v672
    %v686 = vsel %vm286, %v678, %v671
    %v687 = vrot.slane %v663, 1
    %v688 = vrot.slane %v664, 1
    %v689 = vrot.slane %v665, 1
    %v690 = vrot.slane %v666, 1
    %v691 = vrot.slane %v667, 1
    %v692 = vrot.slane %v668, 1
    %v693 = vrot.slane %v669, 1
    %v694 = vrot.slane %v670, 1
    %v695 = vsel %vm303, %v693, %v694
    %v696 = vsel %vm303, %v692, %v693
    %v697 = vsel %vm303, %v691, %v692
    %v698 = vsel %vm303, %v690, %v691
    %v699 = vsel %vm303, %v689, %v690
    %v700 = vsel %vm303, %v688, %v689
    %v701 = vsel %vm303, %v687, %v688
    %v702 = vsel %vm303, %v694, %v687
    %v703 = vsel %vm166, %v686, %v701
    %v704 = vsel %vm167, %v685, %v700
    %v705 = vsel %vm168, %v684, %v699
    %v706 = vsel %vm169, %v683, %v698
    %v707 = vsel %vm170, %v682, %v697
    %v708 = vsel %vm171, %v681, %v696
    %v709 = vsel %vm172, %v680, %v695
    %v710 = vsel %vm173, %v679, %v702
    %v711 = vadd.f32 %v620, %v703
    %v712 = vadd.f32 %v621, %v704
    %v713 = vadd.f32 %v622, %v705
    %v714 = vadd.f32 %v623, %v706
    %v715 = vadd.f32 %v624, %v707
    %v716 = vadd.f32 %v625, %v708
    %v717 = vadd.f32 %v626, %v709
    %v718 = vadd.f32 %v627, %v710
    %v719 = vstv %s490
    %v720 = vmul.f32 %v719, %v529
    %v721 = vmul.f32 %v719, %v530
    %v722 = vmul.f32 %v719, %v531
    %v723 = vmul.f32 %v719, %v532
    %v724 = vmul.f32 %v719, %v533
    %v725 = vmul.f32 %v719, %v534
    %v726 = vmul.f32 %v719, %v535
    %v727 = vmul.f32 %v719, %v536
    %v728 = vstv %s491
    %v729 = vmul.f32 %v728, %v479
    %v730 = vmul.f32 %v728, %v480
    %v731 = vmul.f32 %v728, %v481
    %v732 = vmul.f32 %v728, %v482
    %v733 = vmul.f32 %v728, %v483
    %v734 = vmul.f32 %v728, %v484
    %v735 = vmul.f32 %v728, %v485
    %v736 = vmul.f32 %v728, %v486
    %v737 = vadd.f32 %v720, %v729
    %v738 = vadd.f32 %v721, %v730
    %v739 = vadd.f32 %v722, %v731
    %v740 = vadd.f32 %v723, %v732
    %v741 = vadd.f32 %v724, %v733
    %v742 = vadd.f32 %v725, %v734
    %v743 = vadd.f32 %v726, %v735
    %v744 = vadd.f32 %v727, %v736
    %v745 = vstv %s492
    %v746 = vmul.f32 %v745, %v537
    %v747 = vmul.f32 %v745, %v538
    %v748 = vmul.f32 %v745, %v539
    %v749 = vmul.f32 %v745, %v540
    %v750 = vmul.f32 %v745, %v541
    %v751 = vmul.f32 %v745, %v542
    %v752 = vmul.f32 %v745, %v543
    %v753 = vmul.f32 %v745, %v544
    %v754 = vadd.f32 %v737, %v746
    %v755 = vadd.f32 %v738, %v747
    %v756 = vadd.f32 %v739, %v748
    %v757 = vadd.f32 %v740, %v749
    %v758 = vadd.f32 %v741, %v750
    %v759 = vadd.f32 %v742, %v751
    %v760 = vadd.f32 %v743, %v752
    %v761 = vadd.f32 %v744, %v753
    %v762 = vadd.f32 %v711, %v754
    %v763 = vadd.f32 %v712, %v755
    %v764 = vadd.f32 %v713, %v756
    %v765 = vadd.f32 %v714, %v757
    %v766 = vadd.f32 %v715, %v758
    %v767 = vadd.f32 %v716, %v759
    %v768 = vadd.f32 %v717, %v760
    %v769 = vadd.f32 %v718, %v761
    %v770 = vstv %s496
    %v771 = vadd.f32 %v762, %v770
    %v772 = vadd.f32 %v763, %v770
    %v773 = vadd.f32 %v764, %v770
    %v774 = vadd.f32 %v765, %v770
    %v775 = vadd.f32 %v766, %v770
    %v776 = vadd.f32 %v767, %v770
    %v777 = vadd.f32 %v768, %v770
    %v778 = vadd.f32 %v769, %v770
    %v779 = vmul.f32 %v771, 0.01
    %v780 = vmul.f32 %v772, 0.01
    %v781 = vmul.f32 %v773, 0.01
    %v782 = vmul.f32 %v774, 0.01
    %v783 = vmul.f32 %v775, 0.01
    %v784 = vmul.f32 %v776, 0.01
    %v785 = vmul.f32 %v777, 0.01
    %v786 = vmul.f32 %v778, 0.01
    %v787 = vmax.f32 %v771, %v779
    %v788 = vmax.f32 %v772, %v780
    %v789 = vmax.f32 %v773, %v781
    %v790 = vmax.f32 %v774, %v782
    %v791 = vmax.f32 %v775, %v783
    %v792 = vmax.f32 %v776, %v784
    %v793 = vmax.f32 %v777, %v785
    %v794 = vmax.f32 %v778, %v786
    %s795 = sld [smem:[#allocation2 + $0x12]]
    %s796 = sld [smem:[#allocation2 + $0x13]]
    %s797 = sld [smem:[#allocation2 + $0x14]]
    %s798 = sld [smem:[#allocation2 + $0x15]]
    %s799 = sld [smem:[#allocation2 + $0x16]]
    %s800 = sld [smem:[#allocation2 + $0x17]]
    %s801 = sld [smem:[#allocation2 + $0x18]]
    %s802 = sld [smem:[#allocation2 + $0x19]]
    %s803 = sld [smem:[#allocation2 + $0x1a]]
    %s804 = sld [smem:[#allocation2 + $0x1d]]
    %805 = vrot.lane.b32.xlu0 %v787, 1
    %v806 = vpop.permute.xlu0 %805
    %807 = vrot.lane.b32.xlu0 %v788, 1
    %v808 = vpop.permute.xlu0 %807
    %809 = vrot.lane.b32.xlu0 %v789, 1
    %v810 = vpop.permute.xlu0 %809
    %811 = vrot.lane.b32.xlu0 %v790, 1
    %v812 = vpop.permute.xlu0 %811
    %813 = vrot.lane.b32.xlu0 %v791, 1
    %v814 = vpop.permute.xlu0 %813
    %815 = vrot.lane.b32.xlu0 %v792, 1
    %v816 = vpop.permute.xlu0 %815
    %817 = vrot.lane.b32.xlu0 %v793, 1
    %v818 = vpop.permute.xlu0 %817
    %819 = vrot.lane.b32.xlu0 %v794, 1
    %v820 = vpop.permute.xlu0 %819
    %821 = vrot.lane.b32.xlu0 %v787, 127
    %v822 = vpop.permute.xlu0 %821
    %823 = vrot.lane.b32.xlu0 %v788, 127
    %v824 = vpop.permute.xlu0 %823
    %825 = vrot.lane.b32.xlu0 %v789, 127
    %v826 = vpop.permute.xlu0 %825
    %827 = vrot.lane.b32.xlu0 %v790, 127
    %v828 = vpop.permute.xlu0 %827
    %829 = vrot.lane.b32.xlu0 %v791, 127
    %v830 = vpop.permute.xlu0 %829
    %831 = vrot.lane.b32.xlu0 %v792, 127
    %v832 = vpop.permute.xlu0 %831
    %833 = vrot.lane.b32.xlu0 %v793, 127
    %v834 = vpop.permute.xlu0 %833
    %835 = vrot.lane.b32.xlu0 %v794, 127
    %v836 = vpop.permute.xlu0 %835
    %v837 = vsel %vm175, %v822, %v806
    %v838 = vsel %vm175, %v824, %v808
    %v839 = vsel %vm175, %v826, %v810
    %v840 = vsel %vm175, %v828, %v812
    %v841 = vsel %vm175, %v830, %v814
    %v842 = vsel %vm175, %v832, %v816
    %v843 = vsel %vm175, %v834, %v818
    %v844 = vsel %vm175, %v836, %v820
    %v845 = vsel %vm176, %v806, %v822
    %v846 = vsel %vm176, %v808, %v824
    %v847 = vsel %vm176, %v810, %v826
    %v848 = vsel %vm176, %v812, %v828
    %v849 = vsel %vm176, %v814, %v830
    %v850 = vsel %vm176, %v816, %v832
    %v851 = vsel %vm176, %v818, %v834
    %v852 = vsel %vm176, %v820, %v836
    %v853 = vstv %s795
    %v854 = vmul.f32 %v853, %v837
    %v855 = vmul.f32 %v853, %v838
    %v856 = vmul.f32 %v853, %v839
    %v857 = vmul.f32 %v853, %v840
    %v858 = vmul.f32 %v853, %v841
    %v859 = vmul.f32 %v853, %v842
    %v860 = vmul.f32 %v853, %v843
    %v861 = vmul.f32 %v853, %v844
    %v862 = vstv %s796
    %v863 = vmul.f32 %v862, %v787
    %v864 = vmul.f32 %v862, %v788
    %v865 = vmul.f32 %v862, %v789
    %v866 = vmul.f32 %v862, %v790
    %v867 = vmul.f32 %v862, %v791
    %v868 = vmul.f32 %v862, %v792
    %v869 = vmul.f32 %v862, %v793
    %v870 = vmul.f32 %v862, %v794
    %v871 = vadd.f32 %v854, %v863
    %v872 = vadd.f32 %v855, %v864
    %v873 = vadd.f32 %v856, %v865
    %v874 = vadd.f32 %v857, %v866
    %v875 = vadd.f32 %v858, %v867
    %v876 = vadd.f32 %v859, %v868
    %v877 = vadd.f32 %v860, %v869
    %v878 = vadd.f32 %v861, %v870
    %v879 = vstv %s797
    %v880 = vmul.f32 %v879, %v845
    %v881 = vmul.f32 %v879, %v846
    %v882 = vmul.f32 %v879, %v847
    %v883 = vmul.f32 %v879, %v848
    %v884 = vmul.f32 %v879, %v849
    %v885 = vmul.f32 %v879, %v850
    %v886 = vmul.f32 %v879, %v851
    %v887 = vmul.f32 %v879, %v852
    %v888 = vadd.f32 %v871, %v880
    %v889 = vadd.f32 %v872, %v881
    %v890 = vadd.f32 %v873, %v882
    %v891 = vadd.f32 %v874, %v883
    %v892 = vadd.f32 %v875, %v884
    %v893 = vadd.f32 %v876, %v885
    %v894 = vadd.f32 %v877, %v886
    %v895 = vadd.f32 %v878, %v887
    %v896 = vrot.slane %v888, 7
    %v897 = vrot.slane %v889, 7
    %v898 = vrot.slane %v890, 7
    %v899 = vrot.slane %v891, 7
    %v900 = vrot.slane %v892, 7
    %v901 = vrot.slane %v893, 7
    %v902 = vrot.slane %v894, 7
    %v903 = vrot.slane %v895, 7
    %v904 = vsel %vm286, %v902, %v903
    %v905 = vsel %vm286, %v901, %v902
    %v906 = vsel %vm286, %v900, %v901
    %v907 = vsel %vm286, %v899, %v900
    %v908 = vsel %vm286, %v898, %v899
    %v909 = vsel %vm286, %v897, %v898
    %v910 = vsel %vm286, %v896, %v897
    %v911 = vsel %vm286, %v903, %v896
    %v912 = vrot.slane %v888, 1
    %v913 = vrot.slane %v889, 1
    %v914 = vrot.slane %v890, 1
    %v915 = vrot.slane %v891, 1
    %v916 = vrot.slane %v892, 1
    %v917 = vrot.slane %v893, 1
    %v918 = vrot.slane %v894, 1
    %v919 = vrot.slane %v895, 1
    %v920 = vsel %vm303, %v918, %v919
    %v921 = vsel %vm303, %v917, %v918
    %v922 = vsel %vm303, %v916, %v917
    %v923 = vsel %vm303, %v915, %v916
    %v924 = vsel %vm303, %v914, %v915
    %v925 = vsel %vm303, %v913, %v914
    %v926 = vsel %vm303, %v912, %v913
    %v927 = vsel %vm303, %v919, %v912
    %v928 = vsel %vm158, %v926, %v911
    %v929 = vsel %vm159, %v925, %v910
    %v930 = vsel %vm160, %v924, %v909
    %v931 = vsel %vm161, %v923, %v908
    %v932 = vsel %vm162, %v922, %v907
    %v933 = vsel %vm163, %v921, %v906
    %v934 = vsel %vm164, %v920, %v905
    %v935 = vsel %vm165, %v927, %v904
    %v936 = vstv %s801
    %v937 = vmul.f32 %v936, %v837
    %v938 = vmul.f32 %v936, %v838
    %v939 = vmul.f32 %v936, %v839
    %v940 = vmul.f32 %v936, %v840
    %v941 = vmul.f32 %v936, %v841
    %v942 = vmul.f32 %v936, %v842
    %v943 = vmul.f32 %v936, %v843
    %v944 = vmul.f32 %v936, %v844
    %v945 = vstv %s802
    %v946 = vmul.f32 %v945, %v787
    %v947 = vmul.f32 %v945, %v788
    %v948 = vmul.f32 %v945, %v789
    %v949 = vmul.f32 %v945, %v790
    %v950 = vmul.f32 %v945, %v791
    %v951 = vmul.f32 %v945, %v792
    %v952 = vmul.f32 %v945, %v793
    %v953 = vmul.f32 %v945, %v794
    %v954 = vadd.f32 %v937, %v946
    %v955 = vadd.f32 %v938, %v947
    %v956 = vadd.f32 %v939, %v948
    %v957 = vadd.f32 %v940, %v949
    %v958 = vadd.f32 %v941, %v950
    %v959 = vadd.f32 %v942, %v951
    %v960 = vadd.f32 %v943, %v952
    %v961 = vadd.f32 %v944, %v953
    %v962 = vstv %s803
    %v963 = vmul.f32 %v962, %v845
    %v964 = vmul.f32 %v962, %v846
    %v965 = vmul.f32 %v962, %v847
    %v966 = vmul.f32 %v962, %v848
    %v967 = vmul.f32 %v962, %v849
    %v968 = vmul.f32 %v962, %v850
    %v969 = vmul.f32 %v962, %v851
    %v970 = vmul.f32 %v962, %v852
    %v971 = vadd.f32 %v954, %v963
    %v972 = vadd.f32 %v955, %v964
    %v973 = vadd.f32 %v956, %v965
    %v974 = vadd.f32 %v957, %v966
    %v975 = vadd.f32 %v958, %v967
    %v976 = vadd.f32 %v959, %v968
    %v977 = vadd.f32 %v960, %v969
    %v978 = vadd.f32 %v961, %v970
    %v979 = vrot.slane %v971, 7
    %v980 = vrot.slane %v972, 7
    %v981 = vrot.slane %v973, 7
    %v982 = vrot.slane %v974, 7
    %v983 = vrot.slane %v975, 7
    %v984 = vrot.slane %v976, 7
    %v985 = vrot.slane %v977, 7
    %v986 = vrot.slane %v978, 7
    %v987 = vsel %vm286, %v985, %v986
    %v988 = vsel %vm286, %v984, %v985
    %v989 = vsel %vm286, %v983, %v984
    %v990 = vsel %vm286, %v982, %v983
    %v991 = vsel %vm286, %v981, %v982
    %v992 = vsel %vm286, %v980, %v981
    %v993 = vsel %vm286, %v979, %v980
    %v994 = vsel %vm286, %v986, %v979
    %v995 = vrot.slane %v971, 1
    %v996 = vrot.slane %v972, 1
    %v997 = vrot.slane %v973, 1
    %v998 = vrot.slane %v974, 1
    %v999 = vrot.slane %v975, 1
    %v1000 = vrot.slane %v976, 1
    %v1001 = vrot.slane %v977, 1
    %v1002 = vrot.slane %v978, 1
    %v1003 = vsel %vm303, %v1001, %v1002
    %v1004 = vsel %vm303, %v1000, %v1001
    %v1005 = vsel %vm303, %v999, %v1000
    %v1006 = vsel %vm303, %v998, %v999
    %v1007 = vsel %vm303, %v997, %v998
    %v1008 = vsel %vm303, %v996, %v997
    %v1009 = vsel %vm303, %v995, %v996
    %v1010 = vsel %vm303, %v1002, %v995
    %v1011 = vsel %vm166, %v994, %v1009
    %v1012 = vsel %vm167, %v993, %v1008
    %v1013 = vsel %vm168, %v992, %v1007
    %v1014 = vsel %vm169, %v991, %v1006
    %v1015 = vsel %vm170, %v990, %v1005
    %v1016 = vsel %vm171, %v989, %v1004
    %v1017 = vsel %vm172, %v988, %v1003
    %v1018 = vsel %vm173, %v987, %v1010
    %v1019 = vadd.f32 %v928, %v1011
    %v1020 = vadd.f32 %v929, %v1012
    %v1021 = vadd.f32 %v930, %v1013
    %v1022 = vadd.f32 %v931, %v1014
    %v1023 = vadd.f32 %v932, %v1015
    %v1024 = vadd.f32 %v933, %v1016
    %v1025 = vadd.f32 %v934, %v1017
    %v1026 = vadd.f32 %v935, %v1018
    %v1027 = vstv %s798
    %v1028 = vmul.f32 %v1027, %v837
    %v1029 = vmul.f32 %v1027, %v838
    %v1030 = vmul.f32 %v1027, %v839
    %v1031 = vmul.f32 %v1027, %v840
    %v1032 = vmul.f32 %v1027, %v841
    %v1033 = vmul.f32 %v1027, %v842
    %v1034 = vmul.f32 %v1027, %v843
    %v1035 = vmul.f32 %v1027, %v844
    %v1036 = vstv %s799
    %v1037 = vmul.f32 %v1036, %v787
    %v1038 = vmul.f32 %v1036, %v788
    %v1039 = vmul.f32 %v1036, %v789
    %v1040 = vmul.f32 %v1036, %v790
    %v1041 = vmul.f32 %v1036, %v791
    %v1042 = vmul.f32 %v1036, %v792
    %v1043 = vmul.f32 %v1036, %v793
    %v1044 = vmul.f32 %v1036, %v794
    %v1045 = vadd.f32 %v1028, %v1037
    %v1046 = vadd.f32 %v1029, %v1038
    %v1047 = vadd.f32 %v1030, %v1039
    %v1048 = vadd.f32 %v1031, %v1040
    %v1049 = vadd.f32 %v1032, %v1041
    %v1050 = vadd.f32 %v1033, %v1042
    %v1051 = vadd.f32 %v1034, %v1043
    %v1052 = vadd.f32 %v1035, %v1044
    %v1053 = vstv %s800
    %v1054 = vmul.f32 %v1053, %v845
    %v1055 = vmul.f32 %v1053, %v846
    %v1056 = vmul.f32 %v1053, %v847
    %v1057 = vmul.f32 %v1053, %v848
    %v1058 = vmul.f32 %v1053, %v849
    %v1059 = vmul.f32 %v1053, %v850
    %v1060 = vmul.f32 %v1053, %v851
    %v1061 = vmul.f32 %v1053, %v852
    %v1062 = vadd.f32 %v1045, %v1054
    %v1063 = vadd.f32 %v1046, %v1055
    %v1064 = vadd.f32 %v1047, %v1056
    %v1065 = vadd.f32 %v1048, %v1057
    %v1066 = vadd.f32 %v1049, %v1058
    %v1067 = vadd.f32 %v1050, %v1059
    %v1068 = vadd.f32 %v1051, %v1060
    %v1069 = vadd.f32 %v1052, %v1061
    %v1070 = vadd.f32 %v1019, %v1062
    %v1071 = vadd.f32 %v1020, %v1063
    %v1072 = vadd.f32 %v1021, %v1064
    %v1073 = vadd.f32 %v1022, %v1065
    %v1074 = vadd.f32 %v1023, %v1066
    %v1075 = vadd.f32 %v1024, %v1067
    %v1076 = vadd.f32 %v1025, %v1068
    %v1077 = vadd.f32 %v1026, %v1069
    %v1078 = vstv %s804
    %v1079 = vadd.f32 %v1070, %v1078
    %v1080 = vadd.f32 %v1071, %v1078
    %v1081 = vadd.f32 %v1072, %v1078
    %v1082 = vadd.f32 %v1073, %v1078
    %v1083 = vadd.f32 %v1074, %v1078
    %v1084 = vadd.f32 %v1075, %v1078
    %v1085 = vadd.f32 %v1076, %v1078
    %v1086 = vadd.f32 %v1077, %v1078
    %vm1087 = vcmask 523264
    %1088 = vst.msk [vmem:[#allocation5] sm:$0xff] %vm1087, %v1079
    %1089 = vst.msk [vmem:[#allocation5 + $0x8] sm:$0xff] %vm1087, %v1080
    %1090 = vst.msk [vmem:[#allocation5 + $0x10] sm:$0xff] %vm1087, %v1081
    %1091 = vst.msk [vmem:[#allocation5 + $0x18] sm:$0xff] %vm1087, %v1082
    %1092 = vst.msk [vmem:[#allocation5 + $0x20] sm:$0xff] %vm1087, %v1083
    %1093 = vst.msk [vmem:[#allocation5 + $0x28] sm:$0xff] %vm1087, %v1084
    %1094 = vst.msk [vmem:[#allocation5 + $0x30] sm:$0xff] %vm1087, %v1085
    %1095 = vst.msk [vmem:[#allocation5 + $0x38] sm:$0xff] %vm1087, %v1086
    %1104 = vrot.lane.b32.xlu0 %v1079, 64
    %v1105 = vpop.permute.xlu0 %1104
    %1106 = vrot.lane.b32.xlu0 %v1080, 64
    %v1107 = vpop.permute.xlu0 %1106
    %1108 = vrot.lane.b32.xlu0 %v1081, 64
    %v1109 = vpop.permute.xlu0 %1108
    %1110 = vrot.lane.b32.xlu0 %v1082, 64
    %v1111 = vpop.permute.xlu0 %1110
    %1112 = vrot.lane.b32.xlu0 %v1083, 64
    %v1113 = vpop.permute.xlu0 %1112
    %1114 = vrot.lane.b32.xlu0 %v1084, 64
    %v1115 = vpop.permute.xlu0 %1114
    %1116 = vrot.lane.b32.xlu0 %v1085, 64
    %v1117 = vpop.permute.xlu0 %1116
    %1118 = vrot.lane.b32.xlu0 %v1086, 64
    %v1119 = vpop.permute.xlu0 %1118
    %s1128 = scalar_lea.vmem [#allocation5], 64
    %1129 = vst.msk [vmem:[%s1128] sm:$0xff] %vm1087, %v1105
    %1130 = vst.msk [vmem:[%s1128 + $0x8] sm:$0xff] %vm1087, %v1107
    %1131 = vst.msk [vmem:[%s1128 + $0x10] sm:$0xff] %vm1087, %v1109
    %1132 = vst.msk [vmem:[%s1128 + $0x18] sm:$0xff] %vm1087, %v1111
    %1133 = vst.msk [vmem:[%s1128 + $0x20] sm:$0xff] %vm1087, %v1113
    %1134 = vst.msk [vmem:[%s1128 + $0x28] sm:$0xff] %vm1087, %v1115
    %1135 = vst.msk [vmem:[%s1128 + $0x30] sm:$0xff] %vm1087, %v1117
    %1136 = vst.msk [vmem:[%s1128 + $0x38] sm:$0xff] %vm1087, %v1119
    // Predicated region
    $region22: #{tpu_custom_call.1} parent=1 // pred_check
      _
    $region23: #{tpu_custom_call.1} parent=1 // pred_check_branch
      %1138 = sbr.rel (0) target = $region25
    $region24: #{tpu_custom_call.1} parent=1 // pred_region
      %1140 = vsyncadd [#allocation3], 0
      %s1141 = sshll.u32 [#allocation5], 4
      %s1142 = int_to_ptr.vmem [resolvable:$true] %s1141
      %s1143 = sshll.u32 %s4, 4
      %s1144 = int_to_ptr.hbm [resolvable:$true] %s1143
      %1149 = dma.vmem_to_hbm [thread:$0]  %s1142, 2048, %s1144, [#allocation3], 128, 128, 8
    $region25: #{tpu_custom_call.1} parent=1 // pred_fallthru
      _
    // Predicated region
    $region26: #{tpu_custom_call.1} parent=1 // pred_check
      _
    $region27: #{tpu_custom_call.1} parent=1 // pred_check_branch
      %1151 = sbr.rel (0) target = $region29
    $region28: #{tpu_custom_call.1} parent=1 // pred_region
      %1153 = dma.done [#allocation3], 2048
    $region29: #{tpu_custom_call.1} parent=1 // pred_fallthru
      _
    %1154 = vsyncpa [#allocation3], 1
    %1155 = vsyncpa [#allocation4], 1

</llo_original>
